<compile_context>
chip_gen: v6e
topology: v6e:2x2x1
jax: 0.10.0
libtpu: 0.0.40
codegen_flags: <defaults>
</compile_context>

<pallas_src>
import functools

import jax
import jax.numpy as jnp
from jax.experimental import pallas as pl
from jax.experimental.pallas import tpu as pltpu


def _round_up(n, m):
    return ((n + m - 1) // m) * m


def gated_ffn_kernel(x_ref, wfused_ref, bfused_ref, w2_ref, b2_ref, o_ref):
    """One batch tile: fused first-stage matmul, f32 epilogue, fc2 matmul."""
    x = x_ref[...]                                               # (TM, D_in_p) bf16

    # Single MXU pass over x covering both fc1 and the gate projection.
    h2 = jnp.dot(x, wfused_ref[...],
                 preferred_element_type=jnp.float32) + bfused_ref[...]    # (TM, 2H_p) f32

    h_p = h2.shape[1] // 2                                       # static, multiple of 128
    act = jnp.maximum(h2[:, :h_p], 0.0)                          # ReLU(fc1(x)), f32 (VPU)
    gate = jax.nn.sigmoid(h2[:, h_p:])                           # sigmoid(gate(x)), f32 (EUP)
    gated = (gate * act).astype(w2_ref.dtype)                    # bf16 for the MXU

    out = jnp.dot(gated, w2_ref[...],
                  preferred_element_type=jnp.float32) + b2_ref[...]       # (TM, D_out_p) f32
    o_ref[...] = out.astype(o_ref.dtype)


@functools.partial(jax.jit, static_argnames=("tile_m",))
def gated_feed_forward(x, w1, b1, wg, bg, w2, b2, *, tile_m=256):
    """x: (B, D_in); weights in (in, out) layout; biases as (1, out)."""
    B, d_in = x.shape
    d_hidden = w1.shape[1]
    d_out = w2.shape[1]

    # ---- pad everything to lane-dense, MXU-friendly sizes --------------------
    d_in_p = _round_up(d_in, 128)
    h_p = _round_up(d_hidden, 128)
    d_out_p = _round_up(d_out, 128)

    tm = min(tile_m, _round_up(B, 8))          # batch tile (sublane-aligned)
    b_p = _round_up(B, tm)

    cdt = jnp.bfloat16                         # MXU-native compute dtype

    x_p = jnp.zeros((b_p, d_in_p), cdt).at[:B, :d_in].set(x.astype(cdt))

    # Fused first-stage weight: columns [0, h_p) = fc1, [h_p, 2*h_p) = gate.
    w_fused = jnp.zeros((d_in_p, 2 * h_p), cdt)
    w_fused = w_fused.at[:d_in, :d_hidden].set(w1.astype(cdt))
    w_fused = w_fused.at[:d_in, h_p:h_p + d_hidden].set(wg.astype(cdt))
    b_fused = jnp.zeros((1, 2 * h_p), jnp.float32)
    b_fused = b_fused.at[:, :d_hidden].set(b1.astype(jnp.float32))
    b_fused = b_fused.at[:, h_p:h_p + d_hidden].set(bg.astype(jnp.float32))

    w2_p = jnp.zeros((h_p, d_out_p), cdt).at[:d_hidden, :d_out].set(w2.astype(cdt))
    b2_p = jnp.zeros((1, d_out_p), jnp.float32).at[:, :d_out].set(b2.astype(jnp.float32))

    grid = (b_p // tm,)

    out_dtype = x.dtype

    # ---- VMEM budget: weights (single-buffered) + 2x(x tile + out tile) ------
    weight_bytes = (w_fused.size * 2 + w2_p.size * 2
                    + b_fused.size * 4 + b2_p.size * 4)
    tile_bytes = 2 * (tm * d_in_p * 2 + tm * d_out_p * jnp.dtype(out_dtype).itemsize)
    vmem_limit = min(_round_up(weight_bytes + tile_bytes + (8 << 20), 1 << 20),
                     48 * 1024 * 1024)          # fits v7x's 64 MiB VMEM too

    flops = 2 * b_p * d_in_p * (2 * h_p) + 2 * b_p * h_p * d_out_p
    bytes_accessed = (x_p.size * 2 + w_fused.size * 2 + b_fused.size * 4
                      + w2_p.size * 2 + b2_p.size * 4
                      + b_p * d_out_p * jnp.dtype(out_dtype).itemsize)

    out_p = pl.pallas_call(
        gated_ffn_kernel,
        out_shape=jax.ShapeDtypeStruct((b_p, d_out_p), out_dtype),
        grid_spec=pltpu.PrefetchScalarGridSpec(
            num_scalar_prefetch=0,
            grid=grid,
            in_specs=[
                # x: tiled over the batch grid axis
                pl.BlockSpec((tm, d_in_p), lambda i: (i, 0)),
                # fused weights / biases: constant block -> stay VMEM-resident
                pl.BlockSpec((d_in_p, 2 * h_p), lambda i: (0, 0)),
                pl.BlockSpec((1, 2 * h_p), lambda i: (0, 0)),
                pl.BlockSpec((h_p, d_out_p), lambda i: (0, 0)),
                pl.BlockSpec((1, d_out_p), lambda i: (0, 0)),
            ],
            out_specs=pl.BlockSpec((tm, d_out_p), lambda i: (i, 0)),
        ),
        compiler_params=pltpu.CompilerParams(
            dimension_semantics=("parallel",),   # shard batch tiles across TCs
            vmem_limit_bytes=vmem_limit,
        ),
        cost_estimate=pl.CostEstimate(
            flops=flops,
            transcendentals=b_p * h_p,           # sigmoid exp
            bytes_accessed=bytes_accessed,
        ),
    )(x_p, w_fused, b_fused, w2_p, b2_p)

    # TODO(synk): for very large hidden dims add a trailing "arbitrary" grid axis
    # over H with a VMEM f32 accumulator instead of keeping 2H resident at once.
    return out_p[:B, :d_out]


def init_params(key, input_dim, hidden_dim, output_dim, dtype=jnp.float32):
    """Deterministic init mimicking nn.Linear's U(-1/sqrt(fan_in), 1/sqrt(fan_in))."""
    ks = jax.random.split(key, 6)

    def lin(kw, kb, fan_in, fan_out):
        bound = 1.0 / jnp.sqrt(fan_in)
        w = jax.random.uniform(kw, (fan_in, fan_out), dtype, -bound, bound)
        b = jax.random.uniform(kb, (1, fan_out), dtype, -bound, bound)
        return w, b

    w1, b1 = lin(ks[0], ks[1], input_dim, hidden_dim)   # fc1
    wg, bg = lin(ks[2], ks[3], input_dim, hidden_dim)   # gate
    w2, b2 = lin(ks[4], ks[5], hidden_dim, output_dim)  # fc2
    return w1, b1, wg, bg, w2, b2


def reference(x, w1, b1, wg, bg, w2, b2):
    h = jnp.maximum(x @ w1 + b1, 0.0)
    g = jax.nn.sigmoid(x @ wg + bg)
    return (g * h) @ w2 + b2


if __name__ == "__main__":
    key = jax.random.PRNGKey(0)
    k_x, k_p = jax.random.split(key)

    batch, input_dim, hidden_dim, output_dim = 8, 32, 64, 16
    x = jax.random.normal(k_x, (batch, input_dim), jnp.float32)
    params = init_params(k_p, input_dim, hidden_dim, output_dim)

    out = gated_feed_forward(x, *params)
    jax.block_until_ready(out)

    ref = reference(x, *params)
    assert out.shape == (batch, output_dim)
    # bf16 MXU inputs with f32 accumulation -> slightly looser tolerance vs f32 ref.
    assert jnp.allclose(out, ref, atol=5e-2, rtol=5e-2), (
        float(jnp.max(jnp.abs(out - ref))))

    print("KERNEL_OK")
</pallas_src>

<mosaic_0001>
module attributes {stable_mosaic.version = 11 : i64} {
  func.func @gated_ffn_kernel(%arg0: i32, %arg1: memref<8x128xbf16, #tpu.memory_space<vmem>>, %arg2: memref<128x256xbf16, #tpu.memory_space<vmem>>, %arg3: memref<1x256xf32, #tpu.memory_space<vmem>>, %arg4: memref<128x128xbf16, #tpu.memory_space<vmem>>, %arg5: memref<1x128xf32, #tpu.memory_space<vmem>>, %arg6: memref<8x128xf32, #tpu.memory_space<vmem>>) attributes {dimension_semantics = [#tpu.dimension_semantics<parallel>], iteration_bounds = array<i64: 1>, scalar_prefetch = 0 : i64, scratch_operands = 0 : i64, tpu.core_type = #tpu.core_type<tc>, window_params = [{transform_indices = @transform_0, window_bounds = array<i64: 8, 128>}, {pipeline_mode = #tpu.pipeline_mode<synchronous>, transform_indices = @transform_1, window_bounds = array<i64: 128, 256>}, {pipeline_mode = #tpu.pipeline_mode<synchronous>, transform_indices = @transform_2, window_bounds = array<i64: 1, 256>}, {pipeline_mode = #tpu.pipeline_mode<synchronous>, transform_indices = @transform_3, window_bounds = array<i64: 128, 128>}, {pipeline_mode = #tpu.pipeline_mode<synchronous>, transform_indices = @transform_4, window_bounds = array<i64: 1, 128>}, {transform_indices = @transform_5, window_bounds = array<i64: 8, 128>}]} {
    %c0 = arith.constant 0 : index
    %c0_0 = arith.constant 0 : index
    %0 = vector.load %arg1[%c0, %c0_0] : memref<8x128xbf16, #tpu.memory_space<vmem>>, vector<8x128xbf16>
    %c0_1 = arith.constant 0 : index
    %c0_2 = arith.constant 0 : index
    %1 = vector.load %arg2[%c0_1, %c0_2] : memref<128x256xbf16, #tpu.memory_space<vmem>>, vector<128x256xbf16>
    %cst = arith.constant dense<0.000000e+00> : vector<8x256xf32>
    %2 = tpu.matmul %0, %1, %cst {dimension_numbers = #tpu.dot_dimension_numbers<[1], [0], [0], [1], [0, 0, 1, 1], [], []>} : vector<8x128xbf16>, vector<128x256xbf16>, vector<8x256xf32> -> vector<8x256xf32>
    %c0_3 = arith.constant 0 : index
    %c0_4 = arith.constant 0 : index
    %3 = vector.load %arg3[%c0_3, %c0_4] : memref<1x256xf32, #tpu.memory_space<vmem>>, vector<1x256xf32>
    %4 = vector.broadcast %3 : vector<1x256xf32> to vector<8x256xf32>
    %5 = arith.addf %2, %4 : vector<8x256xf32>
    %6 = vector.extract_strided_slice %5 {offsets = [0, 0], sizes = [8, 128], strides = [1, 1]} : vector<8x256xf32> to vector<8x128xf32>
    %cst_5 = arith.constant 0.000000e+00 : f32
    %7 = vector.broadcast %cst_5 : f32 to vector<8x128xf32>
    %8 = arith.maximumf %6, %7 : vector<8x128xf32>
    %9 = vector.extract_strided_slice %5 {offsets = [0, 128], sizes = [8, 128], strides = [1, 1]} : vector<8x256xf32> to vector<8x128xf32>
    %10 = arith.negf %9 : vector<8x128xf32>
    %11 = math.exp %10 : vector<8x128xf32>
    %cst_6 = arith.constant 1.000000e+00 : f32
    %12 = vector.broadcast %cst_6 : f32 to vector<8x128xf32>
    %13 = arith.addf %12, %11 : vector<8x128xf32>
    %14 = arith.divf %12, %13 : vector<8x128xf32>
    %15 = arith.mulf %14, %8 : vector<8x128xf32>
    %16 = arith.truncf %15 : vector<8x128xf32> to vector<8x128xbf16>
    %c0_7 = arith.constant 0 : index
    %c0_8 = arith.constant 0 : index
    %17 = vector.load %arg4[%c0_7, %c0_8] : memref<128x128xbf16, #tpu.memory_space<vmem>>, vector<128x128xbf16>
    %cst_9 = arith.constant dense<0.000000e+00> : vector<8x128xf32>
    %18 = tpu.matmul %16, %17, %cst_9 {dimension_numbers = #tpu.dot_dimension_numbers<[1], [0], [0], [1], [0, 0, 1, 1], [], []>} : vector<8x128xbf16>, vector<128x128xbf16>, vector<8x128xf32> -> vector<8x128xf32>
    %c0_10 = arith.constant 0 : index
    %c0_11 = arith.constant 0 : index
    %19 = vector.load %arg5[%c0_10, %c0_11] : memref<1x128xf32, #tpu.memory_space<vmem>>, vector<1x128xf32>
    %20 = vector.broadcast %19 : vector<1x128xf32> to vector<8x128xf32>
    %21 = arith.addf %18, %20 : vector<8x128xf32>
    %c0_12 = arith.constant 0 : index
    %c0_13 = arith.constant 0 : index
    %22 = vector.load %arg6[%c0_12, %c0_13] : memref<8x128xf32, #tpu.memory_space<vmem>>, vector<8x128xf32>
    tpu.vector_store %arg6[%c0_12, %c0_13], %21 {strides = array<i32>} : memref<8x128xf32, #tpu.memory_space<vmem>>, vector<8x128xf32>,
    return
  }
  func.func @transform_0(%arg0: i32) -> (i32, i32) {
    %c0_i32 = arith.constant 0 : i32
    %c0_i32_0 = arith.constant 0 : i32
    return %arg0, %c0_i32 : i32, i32
  }
  func.func @transform_1(%arg0: i32) -> (i32, i32) {
    %c0_i32 = arith.constant 0 : i32
    %c0_i32_0 = arith.constant 0 : i32
    %c0_i32_1 = arith.constant 0 : i32
    return %c0_i32, %c0_i32_0 : i32, i32
  }
  func.func @transform_2(%arg0: i32) -> (i32, i32) {
    %c0_i32 = arith.constant 0 : i32
    %c0_i32_0 = arith.constant 0 : i32
    %c0_i32_1 = arith.constant 0 : i32
    return %c0_i32, %c0_i32_0 : i32, i32
  }
  func.func @transform_3(%arg0: i32) -> (i32, i32) {
    %c0_i32 = arith.constant 0 : i32
    %c0_i32_0 = arith.constant 0 : i32
    %c0_i32_1 = arith.constant 0 : i32
    return %c0_i32, %c0_i32_0 : i32, i32
  }
  func.func @transform_4(%arg0: i32) -> (i32, i32) {
    %c0_i32 = arith.constant 0 : i32
    %c0_i32_0 = arith.constant 0 : i32
    %c0_i32_1 = arith.constant 0 : i32
    return %c0_i32, %c0_i32_0 : i32, i32
  }
  func.func @transform_5(%arg0: i32) -> (i32, i32) {
    %c0_i32 = arith.constant 0 : i32
    %c0_i32_0 = arith.constant 0 : i32
    return %arg0, %c0_i32 : i32, i32
  }
}

</mosaic_0001>

<llo_original>
// kernel: gated_feed_forward.1
$region0: #{gated_feed_forward.1}
  #allocation0 [shape = 'u32[]', space=smem, size = 0x4, offset = 0x4, fixed_abs, tag = 'smem constant byte address 0x4 - core index']
  #allocation1 [shape = 'u32[144,128]{1,0:T(1,128)}', space=vmem, size = 0x12000, scoped, tag = 'internal scratch']
  %s0 = inlined_call_operand.vmem [shape: bf16[8,128], index: 0, kind: input, shape index: {}]
  %s1 = inlined_call_operand.vmem [shape: bf16[128,256], index: 1, kind: input, shape index: {}]
  %s2 = inlined_call_operand.vmem [shape: f32[1,256], index: 2, kind: input, shape index: {}]
  %s3 = inlined_call_operand.vmem [shape: bf16[128,128], index: 3, kind: input, shape index: {}]
  %s4 = inlined_call_operand.vmem [shape: f32[1,128], index: 4, kind: input, shape index: {}]
  %s5 = inlined_call_operand.hbm [shape: f32[8,128], index: 5, kind: output, shape index: {}]
  %s6 = sld [smem:[#allocation0]]
  $region30: #{gated_feed_forward.1} parent=0
    _
  %s8 = ssub.s32 1, %s6
  %s9 = scalar_select 0, %s8, %s6
  $region1: #{gated_feed_forward.1} parent=0
    #allocation2 [shape = 'u8[4096]{0}', space=vmem, size = 0x1000, scoped, tag = 'output window, operand 0, single buffered']
    #allocation3 [shape = 's32[1]{0}', space=sflag, size = 0x4, scoped, tag = 'scoped memory for gated_feed_forward.1']
    %10 = vsyncpa [#allocation3], 0
    // Predicated region
    $region2: #{gated_feed_forward.1} parent=1 // pred_check
      _
    $region3: #{gated_feed_forward.1} parent=1 // pred_check_branch
      %12 = sbr.rel (0) target = $region5
    $region4: #{gated_feed_forward.1} parent=1 // pred_region
      _
    $region5: #{gated_feed_forward.1} parent=1 // pred_fallthru
      _
    // Predicated region
    $region6: #{gated_feed_forward.1} parent=1 // pred_check
      _
    $region7: #{gated_feed_forward.1} parent=1 // pred_check_branch
      %14 = sbr.rel (0) target = $region9
    $region8: #{gated_feed_forward.1} parent=1 // pred_region
      _
    $region9: #{gated_feed_forward.1} parent=1 // pred_fallthru
      _
    // Predicated region
    $region10: #{gated_feed_forward.1} parent=1 // pred_check
      _
    $region11: #{gated_feed_forward.1} parent=1 // pred_check_branch
      %16 = sbr.rel (0) target = $region13
    $region12: #{gated_feed_forward.1} parent=1 // pred_region
      _
    $region13: #{gated_feed_forward.1} parent=1 // pred_fallthru
      _
    // Predicated region
    $region14: #{gated_feed_forward.1} parent=1 // pred_check
      _
    $region15: #{gated_feed_forward.1} parent=1 // pred_check_branch
      %18 = sbr.rel (0) target = $region17
    $region16: #{gated_feed_forward.1} parent=1 // pred_region
      _
    $region17: #{gated_feed_forward.1} parent=1 // pred_fallthru
      _
    // Predicated region
    $region18: #{gated_feed_forward.1} parent=1 // pred_check
      _
    $region19: #{gated_feed_forward.1} parent=1 // pred_check_branch
      %20 = sbr.rel (0) target = $region21
    $region20: #{gated_feed_forward.1} parent=1 // pred_region
      _
    $region21: #{gated_feed_forward.1} parent=1 // pred_fallthru
      _
    %v22 = vld [vmem:[%s0] sm:$0xf]
    %v23 = vld [vmem:[%s1] sm:$0xff]
    %v24 = vld [vmem:[%s1 + $0x8] sm:$0xff]
    %v25 = vld [vmem:[%s1 + $0x10] sm:$0xff]
    %v26 = vld [vmem:[%s1 + $0x18] sm:$0xff]
    %v27 = vld [vmem:[%s1 + $0x20] sm:$0xff]
    %v28 = vld [vmem:[%s1 + $0x28] sm:$0xff]
    %v29 = vld [vmem:[%s1 + $0x30] sm:$0xff]
    %v30 = vld [vmem:[%s1 + $0x38] sm:$0xff]
    %v31 = vld [vmem:[%s1 + $0x40] sm:$0xff]
    %v32 = vld [vmem:[%s1 + $0x48] sm:$0xff]
    %v33 = vld [vmem:[%s1 + $0x50] sm:$0xff]
    %v34 = vld [vmem:[%s1 + $0x58] sm:$0xff]
    %v35 = vld [vmem:[%s1 + $0x60] sm:$0xff]
    %v36 = vld [vmem:[%s1 + $0x68] sm:$0xff]
    %v37 = vld [vmem:[%s1 + $0x70] sm:$0xff]
    %v38 = vld [vmem:[%s1 + $0x78] sm:$0xff]
    %v39 = vld [vmem:[%s2] sm:$0x3]
    %v41 = vlaneseq
    %v42 = vshrl.u32 %v41, 7
    %v43 = vsub.s32 0, %v42
    %v44 = vrot.slane %v39, %v43
    %v45 = vlaneseq
    %v46 = vshrl.u32 %v45, 7
    %v47 = vsub.s32 1, %v46
    %v48 = vrot.slane %v39, %v47
    %v67 = vunpack.c.l.b16 %v23
    %v68 = vunpack.c.h.b16 %v23
    %v69 = vunpack.c.l.b16 %v24
    %v70 = vunpack.c.h.b16 %v24
    %v71 = vunpack.c.l.b16 %v25
    %v72 = vunpack.c.h.b16 %v25
    %v73 = vunpack.c.l.b16 %v26
    %v74 = vunpack.c.h.b16 %v26
    %v75 = vunpack.c.l.b16 %v27
    %v76 = vunpack.c.h.b16 %v27
    %v77 = vunpack.c.l.b16 %v28
    %v78 = vunpack.c.h.b16 %v28
    %v79 = vunpack.c.l.b16 %v29
    %v80 = vunpack.c.h.b16 %v29
    %v81 = vunpack.c.l.b16 %v30
    %v82 = vunpack.c.h.b16 %v30
    %v83 = vunpack.c.l.b16 %v31
    %v84 = vunpack.c.h.b16 %v31
    %v85 = vunpack.c.l.b16 %v32
    %v86 = vunpack.c.h.b16 %v32
    %v87 = vunpack.c.l.b16 %v33
    %v88 = vunpack.c.h.b16 %v33
    %v89 = vunpack.c.l.b16 %v34
    %v90 = vunpack.c.h.b16 %v34
    %v91 = vunpack.c.l.b16 %v35
    %v92 = vunpack.c.h.b16 %v35
    %v93 = vunpack.c.l.b16 %v36
    %v94 = vunpack.c.h.b16 %v36
    %v95 = vunpack.c.l.b16 %v37
    %v96 = vunpack.c.h.b16 %v37
    %v97 = vunpack.c.l.b16 %v38
    %v98 = vunpack.c.h.b16 %v38
    %v99 = vpack.c.b16 %v69, %v67
    %v100 = vpack.c.b16 %v70, %v68
    %v101 = vpack.c.b16 %v73, %v71
    %v102 = vpack.c.b16 %v74, %v72
    %v103 = vpack.c.b16 %v77, %v75
    %v104 = vpack.c.b16 %v78, %v76
    %v105 = vpack.c.b16 %v81, %v79
    %v106 = vpack.c.b16 %v82, %v80
    %v107 = vpack.c.b16 %v85, %v83
    %v108 = vpack.c.b16 %v86, %v84
    %v109 = vpack.c.b16 %v89, %v87
    %v110 = vpack.c.b16 %v90, %v88
    %v111 = vpack.c.b16 %v93, %v91
    %v112 = vpack.c.b16 %v94, %v92
    %v113 = vpack.c.b16 %v97, %v95
    %v114 = vpack.c.b16 %v98, %v96
    %131 = vmatprep.subr.bf16.mxu0 %v114
    %132 = vmatpush1.bf16.msra.mxu0 %v113
    %133 = vmatprep.subr.bf16.mxu0 %v112
    %134 = vmatpush1.bf16.msra.mxu0 %v111
    %135 = vmatprep.subr.bf16.mxu0 %v110
    %136 = vmatpush1.bf16.msra.mxu0 %v109
    %137 = vmatprep.subr.bf16.mxu0 %v108
    %138 = vmatpush1.bf16.msra.mxu0 %v107
    %139 = vmatprep.subr.bf16.mxu0 %v106
    %140 = vmatpush1.bf16.msra.mxu0 %v105
    %141 = vmatprep.subr.bf16.mxu0 %v104
    %142 = vmatpush1.bf16.msra.mxu0 %v103
    %143 = vmatprep.subr.bf16.mxu0 %v102
    %144 = vmatpush1.bf16.msra.mxu0 %v101
    %145 = vmatprep.subr.bf16.mxu0 %v100
    %146 = vmatpush1.bf16.msra.mxu0 %v99
    %147 = vmatprep.subr.bf16.mxu0 0
    %148 = vmatpush2.bf16.msra.mxu0 0
    %149 = vmatprep.subr.bf16.mxu0 0
    %150 = vmatpush2.bf16.msra.mxu0 0
    %151 = vmatprep.subr.bf16.mxu0 0
    %152 = vmatpush2.bf16.msra.mxu0 0
    %153 = vmatprep.subr.bf16.mxu0 0
    %154 = vmatpush2.bf16.msra.mxu0 0
    %155 = vmatprep.subr.bf16.mxu0 0
    %156 = vmatpush2.bf16.msra.mxu0 0
    %157 = vmatprep.subr.bf16.mxu0 0
    %158 = vmatpush2.bf16.msra.mxu0 0
    %159 = vmatprep.subr.bf16.mxu0 0
    %160 = vmatpush2.bf16.msra.mxu0 0
    %161 = vmatprep.subr.bf16.mxu0 0
    %162 = vmatpush2.bf16.msra.mxu0 0
    %163 = vmatprep.mubr.bf16.mxu0 0
    %164 = vmatmul.mubr.bf16.gmra.mxu0 %v22
    %v165 = vpop.f32.mrf.mxu0
    %v166 = vadd.f32 %v44, %v165
    %v167 = vpop.f32.mrf.mxu0
    %v168 = vadd.f32 %v48, %v167
    %v169 = vpop.f32.mrf.mxu0
    %v170 = vpop.f32.mrf.mxu0
    %171 = vdwg.mxu0
    %v172 = vmax.f32 %v166, 0.0
    %v173 = vxor.u32 %v168, 2147483648
    %v174 = vmul.f32 %v173, 1.442695
    %v175 = vpow.pop %v174
    %v176 = vadd.f32 %v175, 1.0
    %v177 = vrcp.pop %v176
    %v178 = vmul.f32 1.0, %v177
    %v179 = vmul.f32 %v178, %v172
    %v180 = vpack.c.bf16 %v179, %v179
    %v181 = vld [vmem:[%s3] sm:$0xf]
    %v182 = vld [vmem:[%s3 + $0x4] sm:$0xf]
    %v183 = vld [vmem:[%s3 + $0x8] sm:$0xf]
    %v184 = vld [vmem:[%s3 + $0xc] sm:$0xf]
    %v185 = vld [vmem:[%s3 + $0x10] sm:$0xf]
    %v186 = vld [vmem:[%s3 + $0x14] sm:$0xf]
    %v187 = vld [vmem:[%s3 + $0x18] sm:$0xf]
    %v188 = vld [vmem:[%s3 + $0x1c] sm:$0xf]
    %v189 = vld [vmem:[%s3 + $0x20] sm:$0xf]
    %v190 = vld [vmem:[%s3 + $0x24] sm:$0xf]
    %v191 = vld [vmem:[%s3 + $0x28] sm:$0xf]
    %v192 = vld [vmem:[%s3 + $0x2c] sm:$0xf]
    %v193 = vld [vmem:[%s3 + $0x30] sm:$0xf]
    %v194 = vld [vmem:[%s3 + $0x34] sm:$0xf]
    %v195 = vld [vmem:[%s3 + $0x38] sm:$0xf]
    %v196 = vld [vmem:[%s3 + $0x3c] sm:$0xf]
    %v197 = vld [vmem:[%s4] sm:$0x1]
    %v199 = vlaneseq
    %v200 = vshrl.u32 %v199, 7
    %v201 = vsub.s32 0, %v200
    %v202 = vrot.slane %v197, %v201
    %v220 = vunpack.c.l.b16 %v181
    %v221 = vunpack.c.l.b16 %v182
    %v222 = vunpack.c.l.b16 %v183
    %v223 = vunpack.c.l.b16 %v184
    %v224 = vunpack.c.l.b16 %v185
    %v225 = vunpack.c.l.b16 %v186
    %v226 = vunpack.c.l.b16 %v187
    %v227 = vunpack.c.l.b16 %v188
    %v228 = vunpack.c.l.b16 %v189
    %v229 = vunpack.c.l.b16 %v190
    %v230 = vunpack.c.l.b16 %v191
    %v231 = vunpack.c.l.b16 %v192
    %v232 = vunpack.c.l.b16 %v193
    %v233 = vunpack.c.l.b16 %v194
    %v234 = vunpack.c.l.b16 %v195
    %v235 = vunpack.c.l.b16 %v196
    %v236 = vpack.c.b16 %v221, %v220
    %v237 = vpack.c.b16 %v223, %v222
    %v238 = vpack.c.b16 %v225, %v224
    %v239 = vpack.c.b16 %v227, %v226
    %v240 = vpack.c.b16 %v229, %v228
    %v241 = vpack.c.b16 %v231, %v230
    %v242 = vpack.c.b16 %v233, %v232
    %v243 = vpack.c.b16 %v235, %v234
    %252 = vmatprep.subr.bf16.mxu0 0
    %253 = vmatpush1.bf16.msra.mxu0 %v243
    %254 = vmatprep.subr.bf16.mxu0 0
    %255 = vmatpush1.bf16.msra.mxu0 %v242
    %256 = vmatprep.subr.bf16.mxu0 0
    %257 = vmatpush1.bf16.msra.mxu0 %v241
    %258 = vmatprep.subr.bf16.mxu0 0
    %259 = vmatpush1.bf16.msra.mxu0 %v240
    %260 = vmatprep.subr.bf16.mxu0 0
    %261 = vmatpush1.bf16.msra.mxu0 %v239
    %262 = vmatprep.subr.bf16.mxu0 0
    %263 = vmatpush1.bf16.msra.mxu0 %v238
    %264 = vmatprep.subr.bf16.mxu0 0
    %265 = vmatpush1.bf16.msra.mxu0 %v237
    %266 = vmatprep.subr.bf16.mxu0 0
    %267 = vmatpush1.bf16.msra.mxu0 %v236
    %268 = vmatprep.subr.bf16.mxu0 0
    %269 = vmatpush2.bf16.msra.mxu0 0
    %270 = vmatprep.subr.bf16.mxu0 0
    %271 = vmatpush2.bf16.msra.mxu0 0
    %272 = vmatprep.subr.bf16.mxu0 0
    %273 = vmatpush2.bf16.msra.mxu0 0
    %274 = vmatprep.subr.bf16.mxu0 0
    %275 = vmatpush2.bf16.msra.mxu0 0
    %276 = vmatprep.subr.bf16.mxu0 0
    %277 = vmatpush2.bf16.msra.mxu0 0
    %278 = vmatprep.subr.bf16.mxu0 0
    %279 = vmatpush2.bf16.msra.mxu0 0
    %280 = vmatprep.subr.bf16.mxu0 0
    %281 = vmatpush2.bf16.msra.mxu0 0
    %282 = vmatprep.subr.bf16.mxu0 0
    %283 = vmatpush2.bf16.msra.mxu0 0
    %284 = vmatprep.mubr.bf16.mxu0 0
    %285 = vmatmul.mubr.bf16.gmra.mxu0 %v180
    %v286 = vpop.f32.mrf.mxu0
    %v287 = vadd.f32 %v202, %v286
    %v288 = vpop.f32.mrf.mxu0
    %v289 = vpop.f32.mrf.mxu0
    %v290 = vpop.f32.mrf.mxu0
    %291 = vdwg.mxu0
    %292 = vst [vmem:[#allocation2] sm:$0xff] %v287
    // Predicated region
    $region22: #{gated_feed_forward.1} parent=1 // pred_check
      _
    $region23: #{gated_feed_forward.1} parent=1 // pred_check_branch
      %294 = sbr.rel (0) target = $region25
    $region24: #{gated_feed_forward.1} parent=1 // pred_region
      %s296 = ssub.s32 128, 128
      %297 = vsyncadd [#allocation3], %s296
      %s299 = sshll.u32 [#allocation2], 4
      %s300 = int_to_ptr.vmem [resolvable:$true] %s299
      %302 = dma.vmem_to_hbm [thread:$0]  %s300, 128, %s5, [#allocation3]
    $region25: #{gated_feed_forward.1} parent=1 // pred_fallthru
      _
    // Predicated region
    $region26: #{gated_feed_forward.1} parent=1 // pred_check
      _
    $region27: #{gated_feed_forward.1} parent=1 // pred_check_branch
      %304 = sbr.rel (0) target = $region29
    $region28: #{gated_feed_forward.1} parent=1 // pred_region
      %305 = dma.done [#allocation3], 128
    $region29: #{gated_feed_forward.1} parent=1 // pred_fallthru
      _
    %306 = vsyncpa [#allocation3], 1

</llo_original>
